<compile_context>
chip_gen: v5e
topology: v5e:2x2
jax: 0.10.0
libtpu: 0.0.40
codegen_flags: <defaults>
</compile_context>

<pallas_src>
import functools

import jax
import jax.numpy as jnp
from jax.experimental import pallas as pl
from jax.experimental.pallas import tpu as pltpu


# ----------------------------- kernels ------------------------------------- #
def _reduce_kernel(x_ref, o_ref, *, pool_type):
    x = x_ref[...]                                  # (tbc, d, thw)
    if pool_type == "max":
        o_ref[...] = jnp.max(x, axis=1)             # dense (tbc, thw) store
    else:  # mean -- accumulate in f32 even for bf16 inputs
        m = jnp.mean(x.astype(jnp.float32), axis=1)
        o_ref[...] = m.astype(o_ref.dtype)


def _attention_pool_kernel(x_ref, w_ref, b_ref, o_ref):
    # x_ref: (1, c, d, thw)  features for one batch element / h*w tile,
    #        pixels on lanes, depth on sublanes.
    # w_ref: (3c, c) f32 in SMEM  (rows [0:c)=Wq, [c:2c)=Wk, [2c:3c)=Wv)
    # b_ref: (3c,)   f32 in SMEM
    # o_ref: (1, c, thw)  pooled output, pixels on lanes (lane-dense store).
    _, c, d, thw = x_ref.shape
    x = x_ref[0].astype(jnp.float32)                # (c, d, thw)

    # Fused q/k/v projection (torch Linear: y = x @ W^T + b) as VPU
    # broadcast-MACs over the tiny channel dim; 128 pixels per vreg.
    # TODO(synk): for large num_features switch to one (3c, c) @ (c, d*thw)
    # weights-stationary MXU matmul instead of the unrolled scalar MACs.
    rows = []
    for o in range(3 * c):
        acc = jnp.full((d, thw), b_ref[o], dtype=jnp.float32)
        for ci in range(c):
            acc = acc + w_ref[o, ci] * x[ci]
        rows.append(acc)                            # (d, thw)
    q, k, v = rows[:c], rows[c:2 * c], rows[2 * c:]

    # scores[i, j, p] = sum_c k[c][i, p] * q[c][j, p]   (per-pixel, on VPU)
    s = k[0][:, None, :] * q[0][None, :, :]
    for ci in range(1, c):
        s = s + k[ci][:, None, :] * q[ci][None, :, :]   # (d, d, thw)

    # softmax over j, with the depth-mean folded in:
    #   pooled[c, p] = mean_i sum_j softmax(s)[i, j, p] * v[c][j, p]
    #               = sum_j (mean_i softmax(s)[i, j, p]) * v[c][j, p]
    s = s - jnp.max(s, axis=1, keepdims=True)
    e = jnp.exp(s)
    p_attn = e * (1.0 / jnp.sum(e, axis=1, keepdims=True))
    pbar = jnp.mean(p_attn, axis=0)                 # (d, thw)

    v_arr = jnp.stack(v, axis=0)                    # (c, d, thw)
    pooled = jnp.sum(v_arr * pbar[None, :, :], axis=1)   # (c, thw)
    o_ref[0] = pooled.astype(o_ref.dtype)


# ----------------------------- tiling helpers ------------------------------- #
def _reduce_hw_tile(d, hw, itemsize, row_budget):
    """Lane tile over h*w so a single (d, thw) row stays within row_budget."""
    if hw <= 128 or d * hw * itemsize <= row_budget:
        return hw
    lanes = max(1, row_budget // (d * itemsize * 128))
    return int(min(hw, lanes * 128))                # multiple of 128


def _reduce_row_tile(num_rows, row_bytes, target_bytes=4 << 20,
                     min_split_bytes=512 << 10, min_steps=8):
    """Rows per grid step: ~target_bytes input tiles; >= min_steps total steps
    (>= min_steps/2 per v7x TensorCore) when the tensor is big enough to keep
    each tile above min_split_bytes (amortizes the ~0.35us per-step cost)."""
    if num_rows <= 8:
        return num_rows       # output block sublane dim must be 8-aligned or full
    t = max(1, min(num_rows, target_bytes // max(row_bytes, 1)))
    if pl.cdiv(num_rows, t) < min_steps:
        t_split = max(1, pl.cdiv(num_rows, min_steps))
        if t_split * row_bytes >= min_split_bytes:
            t = t_split
    t = max(8, (t // 8) * 8)                        # 8-aligned output sublanes
    return int(min(t, num_rows))


def _attn_hw_tile(hw, d):
    """Pixel (lane) tile: keep the (d, d, thw) f32 score tensor <= ~64 KiB."""
    lanes = max(1, (64 << 10) // max(d * d * 4, 1) // 128)
    cap = lanes * 128
    return hw if hw <= cap else cap                 # cap is a multiple of 128


# ----------------------------- wrapper --------------------------------------- #
def depth_pool(features, pool_type="mean", params=None):
    """features: (b, c, d, h, w) -> (b, c, 1, h, w), matching DepthPool.forward."""
    b, c, d, h, w = features.shape
    hw = h * w

    if pool_type in ("mean", "max"):
        bc = b * c
        itemsize = features.dtype.itemsize
        x = features.reshape(bc, d, hw)             # free metadata reshape
        row_budget = (4 << 20) // min(max(bc, 1), 8)
        thw = _reduce_hw_tile(d, hw, itemsize, row_budget)
        tbc = _reduce_row_tile(bc, d * thw * itemsize)
        # TODO(synk): if d alone ever makes a (d, 128) column exceed VMEM,
        # add a reduction grid axis over d with an accumulator scratch.
        vmem_limit = int(min(max(
            2 * (tbc * d * thw + tbc * thw) * itemsize + (4 << 20),
            16 << 20), 32 << 20))
        out = pl.pallas_call(
            functools.partial(_reduce_kernel, pool_type=pool_type),
            out_shape=jax.ShapeDtypeStruct((bc, hw), features.dtype),
            grid_spec=pltpu.PrefetchScalarGridSpec(
                num_scalar_prefetch=0,
                grid=(pl.cdiv(bc, tbc), pl.cdiv(hw, thw)),
                in_specs=[pl.BlockSpec((tbc, d, thw), lambda i, j: (i, 0, j))],
                out_specs=pl.BlockSpec((tbc, thw), lambda i, j: (i, j)),
            ),
            compiler_params=pltpu.CompilerParams(
                dimension_semantics=("parallel", "parallel"),
                vmem_limit_bytes=vmem_limit),
        )(x)
        return out.reshape(b, c, 1, h, w)

    if pool_type == "attention":
        assert params is not None, "attention pooling needs projection params"
        x = features.reshape(b, c, d, hw)           # natural layout, no transpose
        thw = _attn_hw_tile(hw, d)
        w_all = jnp.concatenate(
            [params["wq"], params["wk"], params["wv"]], axis=0).astype(jnp.float32)
        b_all = jnp.concatenate(
            [params["bq"], params["bk"], params["bv"]], axis=0).astype(jnp.float32)
        smem_spec = pl.BlockSpec(memory_space=pltpu.MemorySpace.SMEM)
        pooled = pl.pallas_call(
            _attention_pool_kernel,
            out_shape=jax.ShapeDtypeStruct((b, c, hw), features.dtype),
            grid_spec=pltpu.PrefetchScalarGridSpec(
                num_scalar_prefetch=0,
                grid=(b, pl.cdiv(hw, thw)),
                in_specs=[
                    pl.BlockSpec((1, c, d, thw), lambda bi, pi: (bi, 0, 0, pi)),
                    smem_spec, smem_spec],
                out_specs=pl.BlockSpec((1, c, thw), lambda bi, pi: (bi, 0, pi)),
            ),
            compiler_params=pltpu.CompilerParams(
                dimension_semantics=("parallel", "parallel")),
        )(x, w_all, b_all)
        return pooled.reshape(b, c, 1, h, w)

    raise ValueError(f"Unsupported depth pooling {pool_type} type")


# ----------------------- deterministic params -------------------------------- #
def init_attention_params(key, c):
    ks = jax.random.split(key, 6)
    scale = 1.0 / jnp.sqrt(jnp.float32(c))
    u = lambda k, shp: jax.random.uniform(k, shp, jnp.float32, -scale, scale)
    return {
        "wq": u(ks[0], (c, c)), "bq": u(ks[1], (c,)),
        "wk": u(ks[2], (c, c)), "bk": u(ks[3], (c,)),
        "wv": u(ks[4], (c, c)), "bv": u(ks[5], (c,)),
    }


# ----------------------------- reference ------------------------------------- #
def ref_depth_pool(features, pool_type, params):
    if pool_type == "max":
        return jnp.max(features, axis=2, keepdims=True)
    if pool_type == "mean":
        return jnp.mean(features, axis=2, keepdims=True)
    b, c, d, h, w = features.shape
    x = jnp.transpose(features, (0, 3, 4, 2, 1)).reshape(b * h * w, d, c)
    q = x @ params["wq"].T + params["bq"]
    k = x @ params["wk"].T + params["bk"]
    v = x @ params["wv"].T + params["bv"]
    s = jnp.einsum("bic,bjc->bij", k, q)
    p = jax.nn.softmax(s, axis=-1)
    out = jnp.einsum("bij,bjc->bic", p, v)
    pooled = out.mean(axis=1)
    return jnp.transpose(pooled.reshape(b, h, w, c, 1), (0, 3, 4, 1, 2))


# ------------------------------- main ----------------------------------------- #
if __name__ == "__main__":
    key = jax.random.PRNGKey(0)
    k_feat, k_params = jax.random.split(key)

    b, c, d, h, w = 2, 4, 8, 16, 16
    features = jax.random.normal(k_feat, (b, c, d, h, w), jnp.float32)
    params = init_attention_params(k_params, c)

    # Attention now runs entirely in f32 (exact softmax), so the tolerance is
    # only loosened for exp/reduction ordering differences.
    tols = {"mean": 1e-5, "max": 1e-5, "attention": 1e-3}
    for pool_type in ("mean", "max", "attention"):
        out = jax.block_until_ready(depth_pool(features, pool_type, params))
        ref = ref_depth_pool(features, pool_type, params)
        assert out.shape == (b, c, 1, h, w), (pool_type, out.shape)
        tol = tols[pool_type]
        max_err = float(jnp.max(jnp.abs(out - ref)))
        assert jnp.allclose(out, ref, rtol=tol, atol=tol), (pool_type, max_err)

    print("KERNEL_OK")
</pallas_src>

<mosaic_0001>
module attributes {stable_mosaic.version = 11 : i64} {
  func.func @_reduce_kernel(%arg0: i32, %arg1: i32, %arg2: memref<8x8x256xf32, #tpu.memory_space<vmem>>, %arg3: memref<8x256xf32, #tpu.memory_space<vmem>>) attributes {dimension_semantics = [#tpu.dimension_semantics<parallel>, #tpu.dimension_semantics<parallel>], iteration_bounds = array<i64: 1, 1>, scalar_prefetch = 0 : i64, scratch_operands = 0 : i64, tpu.core_type = #tpu.core_type<tc>, window_params = [{transform_indices = @transform_0, window_bounds = array<i64: 8, 8, 256>}, {transform_indices = @transform_1, window_bounds = array<i64: 8, 256>}]} {
    %c0 = arith.constant 0 : index
    %c0_0 = arith.constant 0 : index
    %c0_1 = arith.constant 0 : index
    %0 = vector.load %arg2[%c0, %c0_0, %c0_1] : memref<8x8x256xf32, #tpu.memory_space<vmem>>, vector<8x8x256xf32>
    %cst = arith.constant dense<0.000000e+00> : vector<8x256xf32>
    %1 = vector.multi_reduction <add>, %0, %cst [1] : vector<8x8x256xf32> to vector<8x256xf32>
    %cst_2 = arith.constant 8.000000e+00 : f32
    %2 = vector.broadcast %cst_2 : f32 to vector<8x256xf32>
    %3 = arith.divf %1, %2 : vector<8x256xf32>
    %c0_3 = arith.constant 0 : index
    %c0_4 = arith.constant 0 : index
    %4 = vector.load %arg3[%c0_3, %c0_4] : memref<8x256xf32, #tpu.memory_space<vmem>>, vector<8x256xf32>
    tpu.vector_store %arg3[%c0_3, %c0_4], %3 {strides = array<i32>} : memref<8x256xf32, #tpu.memory_space<vmem>>, vector<8x256xf32>,
    return
  }
  func.func @transform_0(%arg0: i32, %arg1: i32) -> (i32, i32, i32) {
    %c0_i32 = arith.constant 0 : i32
    %c0_i32_0 = arith.constant 0 : i32
    return %arg0, %c0_i32, %arg1 : i32, i32, i32
  }
  func.func @transform_1(%arg0: i32, %arg1: i32) -> (i32, i32) {
    %c0_i32 = arith.constant 0 : i32
    return %arg0, %arg1 : i32, i32
  }
}

</mosaic_0001>

<llo_original>
// kernel: tpu_custom_call.1
$region0: #{tpu_custom_call.1}
  #allocation0 [shape = 'u32[]', space=smem, size = 0x4, offset = 0x4, fixed_abs, tag = 'smem constant byte address 0x4 - core index']
  #allocation1 [shape = 'u32[72,128]{1,0:T(1,128)}', space=vmem, size = 0x9000, scoped, tag = 'internal scratch']
  %s0 = inlined_call_operand.hbm [shape: f32[8,8,256], index: 0, kind: input, shape index: {}]
  %s1 = inlined_call_operand.hbm [shape: f32[8,256], index: 1, kind: output, shape index: {}]
  %s2 = sld [smem:[#allocation0]]
  $region18: #{tpu_custom_call.1} parent=0
    _
  %s4 = ssub.s32 1, %s2
  %s5 = scalar_select 0, %s4, %s2
  $region1: #{tpu_custom_call.1} parent=0
    #allocation2 [shape = 'u8[65536]{0}', space=vmem, size = 0x10000, scoped, tag = 'input window, operand 0, single buffered']
    #allocation3 [shape = 's32[1]{0}', space=sflag, size = 0x4, scoped, tag = 'scoped memory for tpu_custom_call.1']
    #allocation4 [shape = 's32[1]{0}', space=sflag, size = 0x4, scoped, tag = 'scoped memory for tpu_custom_call.1']
    #allocation5 [shape = 'u8[8192]{0}', space=vmem, size = 0x2000, scoped, tag = 'output window, operand 0, single buffered']
    %6 = vsyncpa [#allocation3], 0
    %7 = vsyncpa [#allocation4], 0
    // Predicated region
    $region2: #{tpu_custom_call.1} parent=1 // pred_check
      _
    $region3: #{tpu_custom_call.1} parent=1 // pred_check_branch
      %9 = sbr.rel (0) target = $region5
    $region4: #{tpu_custom_call.1} parent=1 // pred_region
      %11 = vsyncadd [#allocation3], 0
      %s12 = sshll.u32 %s0, 4
      %s13 = int_to_ptr.hbm [resolvable:$true] %s12
      %s14 = sshll.u32 [#allocation2], 4
      %s15 = int_to_ptr.vmem [resolvable:$true] %s14
      %20 = dma.hbm_to_vmem [thread:$0]  %s13, 2048, %s15, [#allocation3], 256, 256, 16
    $region5: #{tpu_custom_call.1} parent=1 // pred_fallthru
      _
    // Predicated region
    $region6: #{tpu_custom_call.1} parent=1 // pred_check
      _
    $region7: #{tpu_custom_call.1} parent=1 // pred_check_branch
      %22 = sbr.rel (0) target = $region9
    $region8: #{tpu_custom_call.1} parent=1 // pred_region
      %24 = dma.done [#allocation3], 2048
    $region9: #{tpu_custom_call.1} parent=1 // pred_fallthru
      _
    %v25 = vld [vmem:[#allocation2] sm:$0xff]
    %v26 = vld [vmem:[#allocation2 + $0x8] sm:$0xff]
    %v27 = vld [vmem:[#allocation2 + $0x10] sm:$0xff]
    %v28 = vld [vmem:[#allocation2 + $0x18] sm:$0xff]
    %v29 = vld [vmem:[#allocation2 + $0x20] sm:$0xff]
    %v30 = vld [vmem:[#allocation2 + $0x28] sm:$0xff]
    %v31 = vld [vmem:[#allocation2 + $0x30] sm:$0xff]
    %v32 = vld [vmem:[#allocation2 + $0x38] sm:$0xff]
    %v33 = vld [vmem:[#allocation2 + $0x40] sm:$0xff]
    %v34 = vld [vmem:[#allocation2 + $0x48] sm:$0xff]
    %v35 = vld [vmem:[#allocation2 + $0x50] sm:$0xff]
    %v36 = vld [vmem:[#allocation2 + $0x58] sm:$0xff]
    %v37 = vld [vmem:[#allocation2 + $0x60] sm:$0xff]
    %v38 = vld [vmem:[#allocation2 + $0x68] sm:$0xff]
    %v39 = vld [vmem:[#allocation2 + $0x70] sm:$0xff]
    %v40 = vld [vmem:[#allocation2 + $0x78] sm:$0xff]
    %v41 = vrot.slane %v25, 4
    %v42 = vadd.f32 %v25, %v41
    %v43 = vrot.slane %v42, 2
    %v44 = vadd.f32 %v42, %v43
    %v45 = vrot.slane %v44, 1
    %v46 = vadd.f32 %v44, %v45
    %v47 = vrot.slane %v26, 4
    %v48 = vadd.f32 %v26, %v47
    %v49 = vrot.slane %v48, 2
    %v50 = vadd.f32 %v48, %v49
    %v51 = vrot.slane %v50, 1
    %v52 = vadd.f32 %v50, %v51
    %v53 = vrot.slane %v27, 4
    %v54 = vadd.f32 %v27, %v53
    %v55 = vrot.slane %v54, 2
    %v56 = vadd.f32 %v54, %v55
    %v57 = vrot.slane %v56, 1
    %v58 = vadd.f32 %v56, %v57
    %v59 = vrot.slane %v28, 4
    %v60 = vadd.f32 %v28, %v59
    %v61 = vrot.slane %v60, 2
    %v62 = vadd.f32 %v60, %v61
    %v63 = vrot.slane %v62, 1
    %v64 = vadd.f32 %v62, %v63
    %v65 = vrot.slane %v29, 4
    %v66 = vadd.f32 %v29, %v65
    %v67 = vrot.slane %v66, 2
    %v68 = vadd.f32 %v66, %v67
    %v69 = vrot.slane %v68, 1
    %v70 = vadd.f32 %v68, %v69
    %v71 = vrot.slane %v30, 4
    %v72 = vadd.f32 %v30, %v71
    %v73 = vrot.slane %v72, 2
    %v74 = vadd.f32 %v72, %v73
    %v75 = vrot.slane %v74, 1
    %v76 = vadd.f32 %v74, %v75
    %v77 = vrot.slane %v31, 4
    %v78 = vadd.f32 %v31, %v77
    %v79 = vrot.slane %v78, 2
    %v80 = vadd.f32 %v78, %v79
    %v81 = vrot.slane %v80, 1
    %v82 = vadd.f32 %v80, %v81
    %v83 = vrot.slane %v32, 4
    %v84 = vadd.f32 %v32, %v83
    %v85 = vrot.slane %v84, 2
    %v86 = vadd.f32 %v84, %v85
    %v87 = vrot.slane %v86, 1
    %v88 = vadd.f32 %v86, %v87
    %v89 = vrot.slane %v33, 4
    %v90 = vadd.f32 %v33, %v89
    %v91 = vrot.slane %v90, 2
    %v92 = vadd.f32 %v90, %v91
    %v93 = vrot.slane %v92, 1
    %v94 = vadd.f32 %v92, %v93
    %v95 = vrot.slane %v34, 4
    %v96 = vadd.f32 %v34, %v95
    %v97 = vrot.slane %v96, 2
    %v98 = vadd.f32 %v96, %v97
    %v99 = vrot.slane %v98, 1
    %v100 = vadd.f32 %v98, %v99
    %v101 = vrot.slane %v35, 4
    %v102 = vadd.f32 %v35, %v101
    %v103 = vrot.slane %v102, 2
    %v104 = vadd.f32 %v102, %v103
    %v105 = vrot.slane %v104, 1
    %v106 = vadd.f32 %v104, %v105
    %v107 = vrot.slane %v36, 4
    %v108 = vadd.f32 %v36, %v107
    %v109 = vrot.slane %v108, 2
    %v110 = vadd.f32 %v108, %v109
    %v111 = vrot.slane %v110, 1
    %v112 = vadd.f32 %v110, %v111
    %v113 = vrot.slane %v37, 4
    %v114 = vadd.f32 %v37, %v113
    %v115 = vrot.slane %v114, 2
    %v116 = vadd.f32 %v114, %v115
    %v117 = vrot.slane %v116, 1
    %v118 = vadd.f32 %v116, %v117
    %v119 = vrot.slane %v38, 4
    %v120 = vadd.f32 %v38, %v119
    %v121 = vrot.slane %v120, 2
    %v122 = vadd.f32 %v120, %v121
    %v123 = vrot.slane %v122, 1
    %v124 = vadd.f32 %v122, %v123
    %v125 = vrot.slane %v39, 4
    %v126 = vadd.f32 %v39, %v125
    %v127 = vrot.slane %v126, 2
    %v128 = vadd.f32 %v126, %v127
    %v129 = vrot.slane %v128, 1
    %v130 = vadd.f32 %v128, %v129
    %v131 = vrot.slane %v40, 4
    %v132 = vadd.f32 %v40, %v131
    %v133 = vrot.slane %v132, 2
    %v134 = vadd.f32 %v132, %v133
    %v135 = vrot.slane %v134, 1
    %v136 = vadd.f32 %v134, %v135
    %v137 = vrcp.pop 8.0
    %v138 = vmul.f32 8.0, %v137
    %v139 = vsub.f32 1.0, %v138
    %v140 = vmul.f32 %v137, %v139
    %v141 = vadd.f32 %v137, %v140
    %vm142 = vweird.f32 %v137
    %v143 = vsel %vm142, %v137, %v141
    %v144 = vmul.f32 %v46, %v143
    %v145 = vmul.f32 %v52, %v143
    %v146 = vmul.f32 %v58, %v143
    %v147 = vmul.f32 %v64, %v143
    %v148 = vmul.f32 %v70, %v143
    %v149 = vmul.f32 %v76, %v143
    %v150 = vmul.f32 %v82, %v143
    %v151 = vmul.f32 %v88, %v143
    %v152 = vmul.f32 %v94, %v143
    %v153 = vmul.f32 %v100, %v143
    %v154 = vmul.f32 %v106, %v143
    %v155 = vmul.f32 %v112, %v143
    %v156 = vmul.f32 %v118, %v143
    %v157 = vmul.f32 %v124, %v143
    %v158 = vmul.f32 %v130, %v143
    %v159 = vmul.f32 %v136, %v143
    %vm176 = vcmask 1041409
    %v177 = vsel %vm176, %v146, %v144
    %vm178 = vcmask 1042434
    %v179 = vsel %vm178, %v148, %v177
    %vm180 = vcmask 1043459
    %v181 = vsel %vm180, %v150, %v179
    %vm182 = vcmask 1044484
    %v183 = vsel %vm182, %v152, %v181
    %vm184 = vcmask 1045509
    %v185 = vsel %vm184, %v154, %v183
    %vm186 = vcmask 1046534
    %v187 = vsel %vm186, %v156, %v185
    %vm188 = vcmask 1047559
    %v189 = vsel %vm188, %v158, %v187
    %v190 = vsel %vm176, %v147, %v145
    %v191 = vsel %vm178, %v149, %v190
    %v192 = vsel %vm180, %v151, %v191
    %v193 = vsel %vm182, %v153, %v192
    %v194 = vsel %vm184, %v155, %v193
    %v195 = vsel %vm186, %v157, %v194
    %v196 = vsel %vm188, %v159, %v195
    %199 = vst [vmem:[#allocation5] sm:$0xff] %v189
    %200 = vst [vmem:[#allocation5 + $0x8] sm:$0xff] %v196
    // Predicated region
    $region10: #{tpu_custom_call.1} parent=1 // pred_check
      _
    $region11: #{tpu_custom_call.1} parent=1 // pred_check_branch
      %202 = sbr.rel (0) target = $region13
    $region12: #{tpu_custom_call.1} parent=1 // pred_region
      %204 = vsyncadd [#allocation4], 0
      %s206 = sshll.u32 [#allocation5], 4
      %s207 = int_to_ptr.vmem [resolvable:$true] %s206
      %s208 = sshll.u32 %s1, 4
      %s209 = int_to_ptr.hbm [resolvable:$true] %s208
      %211 = dma.vmem_to_hbm [thread:$0]  %s207, 256, %s209, [#allocation4]
    $region13: #{tpu_custom_call.1} parent=1 // pred_fallthru
      _
    // Predicated region
    $region14: #{tpu_custom_call.1} parent=1 // pred_check
      _
    $region15: #{tpu_custom_call.1} parent=1 // pred_check_branch
      %213 = sbr.rel (0) target = $region17
    $region16: #{tpu_custom_call.1} parent=1 // pred_region
      %215 = dma.done [#allocation4], 256
    $region17: #{tpu_custom_call.1} parent=1 // pred_fallthru
      _
    %216 = vsyncpa [#allocation3], 1
    %217 = vsyncpa [#allocation4], 1

</llo_original>
